<compile_context>
chip_gen: v7x
topology: tpu7x:2x2x1
jax: 0.10.0
libtpu: 0.0.40
codegen_flags: <defaults>
</compile_context>

<pallas_src>
import functools

import jax
import jax.numpy as jnp
from jax.experimental import pallas as pl
from jax.experimental.pallas import tpu as pltpu


def _conv_bn_relu_kernel(z_ref, w_ref, sel_ref, bias_ref, o_ref,
                         *, n_d, Wp, Mo, compact):
    """Fused stride-phase conv + folded-BN bias + ReLU for one image.

    z_ref:    (1, Kc, L)           bf16  phase-stacked activations, Kc = s*s*C_in
    w_ref:    (n_d*n_d, C_out, Kc) bf16  per-offset weights (BN scale folded,
                                          zero rows for taps outside the kernel)
    sel_ref:  (Mo, Mq)             f32   0/1 gutter-drop matrix (pitch Wp -> W_out)
    bias_ref: (C_out, 1)           f32   folded BatchNorm bias
    o_ref:    (1, C_out, Mq)       f32   Mq = H_out * W_out (exact NCHW flat)
    """
    z = z_ref[0]                                     # (Kc, L) bf16
    acc = None
    g = 0
    for dh in range(n_d):
        for dw in range(n_d):
            off = dh * Wp + dw                       # static lane offset
            x_g = z[:, off:off + Mo]                 # (Kc, Mo) static slice
            d = jnp.dot(w_ref[g], x_g, preferred_element_type=jnp.float32)
            acc = d if acc is None else acc + d
            g += 1
    if compact:
        # Exact 0/1 selection matmul drops the gutter columns on the MXU.
        acc = jnp.dot(acc, sel_ref[...], preferred_element_type=jnp.float32)
    y = acc + bias_ref[...]                          # folded BN bias
    o_ref[0] = jnp.maximum(y, 0.0).astype(o_ref.dtype)   # ReLU


def conv_bn_relu(x_nchw, weight, gamma, beta, running_mean, running_var,
                 *, stride=2, eps=1e-5):
    N, C_in, H, W = x_nchw.shape
    C_out, _, k, _ = weight.shape
    s = int(stride)
    pad = (k - 1) // 2
    H_out = (H + 2 * pad - k) // s + 1
    W_out = (W + 2 * pad - k) // s + 1

    d_max = (k - 1) // s            # max tap offset within a phase plane
    n_d = d_max + 1                 # number of offsets per spatial axis
    # Phase-plane geometry: padded row pitch so shifted flat views stay in bounds.
    Wp = max(W_out + d_max, -(-(W + pad) // s))
    Hp = max(H_out + d_max + (1 if d_max > 0 else 0), -(-(H + pad) // s))
    L = Hp * Wp
    Mo = H_out * Wp                 # padded-pitch accumulator width
    Mq = H_out * W_out              # exact NCHW spatial width (kernel output lanes)
    Kc = s * s * C_in               # stacked contraction rows (full bf16 sublane grp)

    # --- activation pre-pass entirely in bf16 (one fused pad+reshape+transpose).
    #   z[n, (ph*s+pw)*C_in + ci, i*Wp + j] = x_pad[n, ci, i*s+ph, j*s+pw]
    xb = x_nchw.astype(jnp.bfloat16)
    x_pad = jnp.pad(xb, ((0, 0), (0, 0),
                         (pad, s * Hp - H - pad), (pad, s * Wp - W - pad)))
    z = x_pad.reshape(N, C_in, Hp, s, Wp, s)
    z = jnp.transpose(z, (0, 3, 5, 1, 2, 4)).reshape(N, Kc, L)

    # --- fold inference-mode BN scale into the conv weights; keep only the bias.
    inv_std = jax.lax.rsqrt(running_var.astype(jnp.float32) + eps)
    scale = gamma.astype(jnp.float32) * inv_std                      # (C_out,)
    bias = (beta.astype(jnp.float32)
            - running_mean.astype(jnp.float32) * scale).reshape(C_out, 1)
    w_f = weight.astype(jnp.float32) * scale[:, None, None, None]    # OIHW, scaled

    # Per-offset weight blocks, zero-padded so every dot has K = s*s*C_in rows
    # matching z's row order ((ph*s+pw)*C_in + ci).
    w_g = jnp.zeros((n_d, n_d, s, s, C_out, C_in), jnp.float32)
    for dh in range(n_d):
        for dw in range(n_d):
            for ph in range(s):
                for pw in range(s):
                    kh, kw = dh * s + ph, dw * s + pw
                    if kh < k and kw < k:
                        w_g = w_g.at[dh, dw, ph, pw].set(w_f[:, :, kh, kw])
    w_g = jnp.transpose(w_g, (0, 1, 4, 2, 3, 5)).reshape(n_d * n_d, C_out, Kc)
    w_g = w_g.astype(jnp.bfloat16)

    # 0/1 selection matrix mapping padded pitch Wp columns -> W_out columns.
    compact = (Wp != W_out)
    if compact:
        m = jnp.arange(Mo)
        q = jnp.arange(Mq)
        sel = ((m[:, None] // Wp == q[None, :] // W_out)
               & (m[:, None] % Wp == q[None, :] % W_out)).astype(jnp.float32)
    else:
        sel = jnp.eye(Mq, dtype=jnp.float32)

    # VMEM budget: double-buffered per-step blocks + resident weights/sel/bias,
    # 4x headroom, capped well below v7x's 64 MiB physical VMEM.
    blk_bytes = Kc * L * 2 + C_out * Mq * 4
    res_bytes = n_d * n_d * C_out * Kc * 2 + Mo * Mq * 4 + C_out * 4
    vmem_limit = int(min(24 * 1024 * 1024,
                         max(4 * 1024 * 1024, 4 * (2 * blk_bytes + res_bytes))))

    cost = pl.CostEstimate(
        flops=2 * N * (n_d * n_d * C_out * Kc * Mo
                       + (C_out * Mo * Mq if compact else 0)),
        transcendentals=0,
        bytes_accessed=int(z.size * 2 + w_g.size * 2 + sel.size * 4
                           + bias.size * 4 + N * C_out * Mq * 4))

    kernel = functools.partial(_conv_bn_relu_kernel, n_d=n_d, Wp=Wp, Mo=Mo,
                               compact=compact)
    out = pl.pallas_call(
        kernel,
        out_shape=jax.ShapeDtypeStruct((N, C_out, Mq), jnp.float32),
        grid_spec=pltpu.PrefetchScalarGridSpec(
            num_scalar_prefetch=0,
            grid=(N,),                                    # N=2 -> both v7x TCs busy
            in_specs=[
                pl.BlockSpec((1, Kc, L), lambda n: (n, 0, 0)),
                pl.BlockSpec((n_d * n_d, C_out, Kc), lambda n: (0, 0, 0)),
                pl.BlockSpec((Mo, Mq), lambda n: (0, 0)),
                pl.BlockSpec((C_out, 1), lambda n: (0, 0)),
            ],
            out_specs=pl.BlockSpec((1, C_out, Mq), lambda n: (n, 0, 0)),
        ),
        compiler_params=pltpu.CompilerParams(
            dimension_semantics=("parallel",),
            vmem_limit_bytes=vmem_limit),
        cost_estimate=cost,
    )(z, w_g, sel, bias)

    # (N, C_out, H_out*W_out) -> NCHW is a contiguous, metadata-only reshape:
    # no gutter-drop slice, no transpose, no extra HBM pass.
    return out.reshape(N, C_out, H_out, W_out)


if __name__ == "__main__":
    # Module hyper-params: convolution(k=3, inp_dim=4, out_dim=8, stride=2, with_bn=True)
    k, C_in, C_out, stride = 3, 4, 8, 2
    N, H, W = 2, 16, 16

    key = jax.random.PRNGKey(0)
    kx, kw_ = jax.random.split(key)
    x = jax.random.normal(kx, (N, C_in, H, W), dtype=jnp.float32)
    # Conv2d weight, OIHW, no bias (with_bn=True)
    weight = jax.random.normal(kw_, (C_out, C_in, k, k), dtype=jnp.float32) * 0.1
    # BatchNorm2d params (fresh-module defaults, slightly perturbed gamma/beta)
    gamma = jnp.linspace(0.5, 1.5, C_out, dtype=jnp.float32)
    beta = jnp.linspace(-0.1, 0.1, C_out, dtype=jnp.float32)
    running_mean = jnp.zeros((C_out,), jnp.float32)
    running_var = jnp.ones((C_out,), jnp.float32)

    out = conv_bn_relu(x, weight, gamma, beta, running_mean, running_var,
                       stride=stride)
    jax.block_until_ready(out)

    # Reference: XLA conv + folded (inference-mode) BN + ReLU, all in f32.
    pad = (k - 1) // 2
    ref = jax.lax.conv_general_dilated(
        x, weight, (stride, stride), [(pad, pad), (pad, pad)],
        dimension_numbers=("NCHW", "OIHW", "NCHW"))
    inv_std = 1.0 / jnp.sqrt(running_var + 1e-5)
    ref = ref * (gamma * inv_std)[None, :, None, None] + \
        (beta - running_mean * gamma * inv_std)[None, :, None, None]
    ref = jnp.maximum(ref, 0.0)

    assert out.shape == (N, C_out, H // stride, W // stride), out.shape
    # bf16 matmul operands -> loosened tolerance vs the exact-f32 reference.
    assert jnp.allclose(out, ref, atol=5e-2, rtol=5e-2), \
        float(jnp.max(jnp.abs(out - ref)))

    print("KERNEL_OK")
</pallas_src>

<mosaic_0001>
module attributes {stable_mosaic.version = 11 : i64} {
  func.func @_conv_bn_relu_kernel(%arg0: i32, %arg1: memref<1x16x90xbf16, #tpu.memory_space<vmem>>, %arg2: memref<4x8x16xbf16, #tpu.memory_space<vmem>>, %arg3: memref<72x64xf32, #tpu.memory_space<vmem>>, %arg4: memref<8x1xf32, #tpu.memory_space<vmem>>, %arg5: memref<1x8x64xf32, #tpu.memory_space<vmem>>) attributes {dimension_semantics = [#tpu.dimension_semantics<parallel>], iteration_bounds = array<i64: 2>, scalar_prefetch = 0 : i64, scratch_operands = 0 : i64, tpu.core_type = #tpu.core_type<tc>, window_params = [{transform_indices = @transform_0, window_bounds = array<i64: 1, 16, 90>}, {pipeline_mode = #tpu.pipeline_mode<synchronous>, transform_indices = @transform_1, window_bounds = array<i64: 4, 8, 16>}, {pipeline_mode = #tpu.pipeline_mode<synchronous>, transform_indices = @transform_2, window_bounds = array<i64: 72, 64>}, {pipeline_mode = #tpu.pipeline_mode<synchronous>, transform_indices = @transform_3, window_bounds = array<i64: 8, 1>}, {transform_indices = @transform_4, window_bounds = array<i64: 1, 8, 64>}]} {
    %c0 = arith.constant 0 : index
    %c0_0 = arith.constant 0 : index
    %c0_1 = arith.constant 0 : index
    %0 = vector.load %arg1[%c0, %c0_0, %c0_1] : memref<1x16x90xbf16, #tpu.memory_space<vmem>>, vector<1x16x90xbf16>
    %1 = vector.shape_cast %0 : vector<1x16x90xbf16> to vector<16x90xbf16>
    %2 = vector.extract_strided_slice %1 {offsets = [0, 0], sizes = [16, 72], strides = [1, 1]} : vector<16x90xbf16> to vector<16x72xbf16>
    %c0_2 = arith.constant 0 : index
    %c0_3 = arith.constant 0 : index
    %c0_4 = arith.constant 0 : index
    %3 = vector.load %arg2[%c0_2, %c0_3, %c0_4] : memref<4x8x16xbf16, #tpu.memory_space<vmem>>, vector<1x8x16xbf16>
    %4 = vector.shape_cast %3 : vector<1x8x16xbf16> to vector<8x16xbf16>
    %cst = arith.constant dense<0.000000e+00> : vector<8x72xf32>
    %5 = tpu.matmul %4, %2, %cst {dimension_numbers = #tpu.dot_dimension_numbers<[1], [0], [0], [1], [0, 0, 1, 1], [], []>} : vector<8x16xbf16>, vector<16x72xbf16>, vector<8x72xf32> -> vector<8x72xf32>
    %6 = vector.extract_strided_slice %1 {offsets = [0, 1], sizes = [16, 72], strides = [1, 1]} : vector<16x90xbf16> to vector<16x72xbf16>
    %c1 = arith.constant 1 : index
    %c0_5 = arith.constant 0 : index
    %c0_6 = arith.constant 0 : index
    %7 = vector.load %arg2[%c1, %c0_5, %c0_6] : memref<4x8x16xbf16, #tpu.memory_space<vmem>>, vector<1x8x16xbf16>
    %8 = vector.shape_cast %7 : vector<1x8x16xbf16> to vector<8x16xbf16>
    %cst_7 = arith.constant dense<0.000000e+00> : vector<8x72xf32>
    %9 = tpu.matmul %8, %6, %cst_7 {dimension_numbers = #tpu.dot_dimension_numbers<[1], [0], [0], [1], [0, 0, 1, 1], [], []>} : vector<8x16xbf16>, vector<16x72xbf16>, vector<8x72xf32> -> vector<8x72xf32>
    %10 = arith.addf %5, %9 : vector<8x72xf32>
    %11 = vector.extract_strided_slice %1 {offsets = [0, 9], sizes = [16, 72], strides = [1, 1]} : vector<16x90xbf16> to vector<16x72xbf16>
    %c2 = arith.constant 2 : index
    %c0_8 = arith.constant 0 : index
    %c0_9 = arith.constant 0 : index
    %12 = vector.load %arg2[%c2, %c0_8, %c0_9] : memref<4x8x16xbf16, #tpu.memory_space<vmem>>, vector<1x8x16xbf16>
    %13 = vector.shape_cast %12 : vector<1x8x16xbf16> to vector<8x16xbf16>
    %cst_10 = arith.constant dense<0.000000e+00> : vector<8x72xf32>
    %14 = tpu.matmul %13, %11, %cst_10 {dimension_numbers = #tpu.dot_dimension_numbers<[1], [0], [0], [1], [0, 0, 1, 1], [], []>} : vector<8x16xbf16>, vector<16x72xbf16>, vector<8x72xf32> -> vector<8x72xf32>
    %15 = arith.addf %10, %14 : vector<8x72xf32>
    %16 = vector.extract_strided_slice %1 {offsets = [0, 10], sizes = [16, 72], strides = [1, 1]} : vector<16x90xbf16> to vector<16x72xbf16>
    %c3 = arith.constant 3 : index
    %c0_11 = arith.constant 0 : index
    %c0_12 = arith.constant 0 : index
    %17 = vector.load %arg2[%c3, %c0_11, %c0_12] : memref<4x8x16xbf16, #tpu.memory_space<vmem>>, vector<1x8x16xbf16>
    %18 = vector.shape_cast %17 : vector<1x8x16xbf16> to vector<8x16xbf16>
    %cst_13 = arith.constant dense<0.000000e+00> : vector<8x72xf32>
    %19 = tpu.matmul %18, %16, %cst_13 {dimension_numbers = #tpu.dot_dimension_numbers<[1], [0], [0], [1], [0, 0, 1, 1], [], []>} : vector<8x16xbf16>, vector<16x72xbf16>, vector<8x72xf32> -> vector<8x72xf32>
    %20 = arith.addf %15, %19 : vector<8x72xf32>
    %c0_14 = arith.constant 0 : index
    %c0_15 = arith.constant 0 : index
    %21 = vector.load %arg3[%c0_14, %c0_15] : memref<72x64xf32, #tpu.memory_space<vmem>>, vector<72x64xf32>
    %cst_16 = arith.constant dense<0.000000e+00> : vector<8x64xf32>
    %22 = tpu.matmul %20, %21, %cst_16 {dimension_numbers = #tpu.dot_dimension_numbers<[1], [0], [0], [1], [0, 0, 1, 1], [], []>} : vector<8x72xf32>, vector<72x64xf32>, vector<8x64xf32> -> vector<8x64xf32>
    %c0_17 = arith.constant 0 : index
    %c0_18 = arith.constant 0 : index
    %23 = vector.load %arg4[%c0_17, %c0_18] : memref<8x1xf32, #tpu.memory_space<vmem>>, vector<8x1xf32>
    %24 = vector.broadcast %23 : vector<8x1xf32> to vector<8x64xf32>
    %25 = arith.addf %22, %24 : vector<8x64xf32>
    %cst_19 = arith.constant 0.000000e+00 : f32
    %26 = vector.broadcast %cst_19 : f32 to vector<8x64xf32>
    %27 = arith.maximumf %25, %26 : vector<8x64xf32>
    %c0_20 = arith.constant 0 : index
    %c0_21 = arith.constant 0 : index
    %c0_22 = arith.constant 0 : index
    %28 = vector.load %arg5[%c0_20, %c0_21, %c0_22] : memref<1x8x64xf32, #tpu.memory_space<vmem>>, vector<1x8x64xf32>
    %29 = vector.shape_cast %28 : vector<1x8x64xf32> to vector<8x64xf32>
    %30 = vector.shape_cast %27 : vector<8x64xf32> to vector<1x8x64xf32>
    tpu.vector_store %arg5[%c0_20, %c0_21, %c0_22], %30 {strides = array<i32>} : memref<1x8x64xf32, #tpu.memory_space<vmem>>, vector<1x8x64xf32>,
    return
  }
  func.func @transform_0(%arg0: i32) -> (i32, i32, i32) {
    %c0_i32 = arith.constant 0 : i32
    %c0_i32_0 = arith.constant 0 : i32
    %c0_i32_1 = arith.constant 0 : i32
    return %arg0, %c0_i32, %c0_i32_0 : i32, i32, i32
  }
  func.func @transform_1(%arg0: i32) -> (i32, i32, i32) {
    %c0_i32 = arith.constant 0 : i32
    %c0_i32_0 = arith.constant 0 : i32
    %c0_i32_1 = arith.constant 0 : i32
    %c0_i32_2 = arith.constant 0 : i32
    return %c0_i32, %c0_i32_0, %c0_i32_1 : i32, i32, i32
  }
  func.func @transform_2(%arg0: i32) -> (i32, i32) {
    %c0_i32 = arith.constant 0 : i32
    %c0_i32_0 = arith.constant 0 : i32
    %c0_i32_1 = arith.constant 0 : i32
    return %c0_i32, %c0_i32_0 : i32, i32
  }
  func.func @transform_3(%arg0: i32) -> (i32, i32) {
    %c0_i32 = arith.constant 0 : i32
    %c0_i32_0 = arith.constant 0 : i32
    %c0_i32_1 = arith.constant 0 : i32
    return %c0_i32, %c0_i32_0 : i32, i32
  }
  func.func @transform_4(%arg0: i32) -> (i32, i32, i32) {
    %c0_i32 = arith.constant 0 : i32
    %c0_i32_0 = arith.constant 0 : i32
    %c0_i32_1 = arith.constant 0 : i32
    return %arg0, %c0_i32, %c0_i32_0 : i32, i32, i32
  }
}

</mosaic_0001>

<llo_original>
// kernel: tpu_custom_call.1
$region0: #{tpu_custom_call.1}
  #allocation0 [shape = 'u32[]', space=smem, size = 0x4, offset = 0x4, fixed_abs, tag = 'smem constant byte address 0x4 - core index']
  #allocation1 [shape = 'u32[144,128]{1,0:T(1,128)}', space=vmem, size = 0x12000, scoped, tag = 'internal scratch']
  %s0 = inlined_call_operand.vmem [shape: bf16[2,16,90], index: 0, kind: input, shape index: {}]
  %s1 = inlined_call_operand.vmem [shape: bf16[4,8,16], index: 1, kind: input, shape index: {}]
  %s2 = inlined_call_operand.vmem [shape: f32[72,64], index: 2, kind: input, shape index: {}]
  %s3 = inlined_call_operand.vmem [shape: f32[8,1], index: 3, kind: input, shape index: {}]
  %s4 = inlined_call_operand.hbm [shape: f32[2,8,64], index: 4, kind: output, shape index: {}]
  %s5 = sld [smem:[#allocation0]]
  $region49: #{tpu_custom_call.1} parent=0
    _
  %s7 = ssub.s32 1, %s5
  %s8 = scalar_select 0, %s7, %s5
  $region1: #{tpu_custom_call.1} parent=0
    #allocation2 [shape = 'u8[8192]{0}', space=vmem, size = 0x2000, scoped, tag = 'output window, operand 0']
    #allocation3 [shape = 's32[2]{0}', space=sflag, size = 0x8, scoped, tag = 'scoped memory for tpu_custom_call.1']
    %9 = vsyncpa [#allocation3], 0
    %s10 = scalar_lea.sflag [#allocation3], 1
    %11 = vsyncpa %s10, 0
    loop: start=0, step=1, limit=4
    $region2: #{tpu_custom_call.1} parent=1 // loop_pre_header
      _
    $region3: #{tpu_custom_call.1} parent=1 // loop_header
      %s13 = sphi 0, %s17
      %p14 = scmp.ge.s32.totalorder %s13, 4
      %s23 = sphi 0, %s25
      %s26 = sphi 0, %s23
      %s27 = sphi 0, %s26
      %s43 = sphi 0, %s27
      %s47 = sphi 0, %s47
      %s49 = sphi 0, %s47
      %s50 = sphi 0, %s49
      %s64 = sphi 0, %s50
      %s68 = sphi 0, %s68
      %s70 = sphi 0, %s68
      %s71 = sphi 0, %s70
      %s85 = sphi 0, %s71
      %s89 = sphi 0, %s89
      %s91 = sphi 0, %s89
      %s92 = sphi 0, %s91
      %s106 = sphi 0, %s92
      %s112 = sphi 0, %s114
      %s115 = sphi 0, %s112
      %s116 = sphi 0, %s115
      %s132 = sphi 0, %s116
    $region4: #{tpu_custom_call.1} parent=1 // loop_header_branch
      %16 = sbr.rel (%p14) target = $region8
    $region5: #{tpu_custom_call.1} parent=1 // loop_body
      %s18 = ssub.s32 %s13, 1
      %s19 = ssub.s32 %s13, 2
      %s20 = sadd.s32 %s13, 1
      %s21 = ssub.s32 %s13, %s20
      %p22 = scmp.eq.s32.totalorder %s21, 0
      %s24 = sadd.s32 %s23, 1
      %s25 = scalar_select %p22, %s23, %s24
      %p28 = pneg %p22
      %p29 = scmp.eq.s32.totalorder %s13, 1
      %p30 = por %p28, %p29
      %p31 = scmp.ne.s32.totalorder %s23, %s26
      %p32 = scmp.eq.s32.totalorder %s13, 0
      %p33 = por %p31, %p32
      %p34 = scmp.ne.s32.totalorder %s23, %s26
      %p35 = scmp.eq.s32.totalorder %s18, 1
      %p36 = por %p34, %p35
      %p37 = scmp.ne.s32.totalorder %s26, %s27
      %p38 = scmp.eq.s32.totalorder %s18, 0
      %p39 = por %p37, %p38
      %p40 = scmp.ne.s32.totalorder %s26, %s27
      %p41 = scmp.eq.s32.totalorder %s19, 1
      %p42 = por %p40, %p41
      %p44 = scmp.ne.s32.totalorder %s27, %s43
      %p45 = scmp.eq.s32.totalorder %s19, 0
      %p46 = por %p44, %p45
      %s48 = sadd.s32 %s47, 1
      %p51 = scmp.eq.s32.totalorder %s13, 1
      %p52 = scmp.ne.s32.totalorder %s47, %s49
      %p53 = scmp.eq.s32.totalorder %s13, 0
      %p54 = por %p52, %p53
      %p55 = scmp.ne.s32.totalorder %s47, %s49
      %p56 = scmp.eq.s32.totalorder %s18, 1
      %p57 = por %p55, %p56
      %p58 = scmp.ne.s32.totalorder %s49, %s50
      %p59 = scmp.eq.s32.totalorder %s18, 0
      %p60 = por %p58, %p59
      %p61 = scmp.ne.s32.totalorder %s49, %s50
      %p62 = scmp.eq.s32.totalorder %s19, 1
      %p63 = por %p61, %p62
      %p65 = scmp.ne.s32.totalorder %s50, %s64
      %p66 = scmp.eq.s32.totalorder %s19, 0
      %p67 = por %p65, %p66
      %s69 = sadd.s32 %s68, 1
      %p72 = scmp.eq.s32.totalorder %s13, 1
      %p73 = scmp.ne.s32.totalorder %s68, %s70
      %p74 = scmp.eq.s32.totalorder %s13, 0
      %p75 = por %p73, %p74
      %p76 = scmp.ne.s32.totalorder %s68, %s70
      %p77 = scmp.eq.s32.totalorder %s18, 1
      %p78 = por %p76, %p77
      %p79 = scmp.ne.s32.totalorder %s70, %s71
      %p80 = scmp.eq.s32.totalorder %s18, 0
      %p81 = por %p79, %p80
      %p82 = scmp.ne.s32.totalorder %s70, %s71
      %p83 = scmp.eq.s32.totalorder %s19, 1
      %p84 = por %p82, %p83
      %p86 = scmp.ne.s32.totalorder %s71, %s85
      %p87 = scmp.eq.s32.totalorder %s19, 0
      %p88 = por %p86, %p87
      %s90 = sadd.s32 %s89, 1
      %p93 = scmp.eq.s32.totalorder %s13, 1
      %p94 = scmp.ne.s32.totalorder %s89, %s91
      %p95 = scmp.eq.s32.totalorder %s13, 0
      %p96 = por %p94, %p95
      %p97 = scmp.ne.s32.totalorder %s89, %s91
      %p98 = scmp.eq.s32.totalorder %s18, 1
      %p99 = por %p97, %p98
      %p100 = scmp.ne.s32.totalorder %s91, %s92
      %p101 = scmp.eq.s32.totalorder %s18, 0
      %p102 = por %p100, %p101
      %p103 = scmp.ne.s32.totalorder %s91, %s92
      %p104 = scmp.eq.s32.totalorder %s19, 1
      %p105 = por %p103, %p104
      %p107 = scmp.ne.s32.totalorder %s92, %s106
      %p108 = scmp.eq.s32.totalorder %s19, 0
      %p109 = por %p107, %p108
      %s110 = ssub.s32 %s13, %s20
      %p111 = scmp.eq.s32.totalorder %s110, 0
      %s113 = sadd.s32 %s112, 1
      %s114 = scalar_select %p111, %s112, %s113
      %p117 = pneg %p111
      %p118 = scmp.eq.s32.totalorder %s13, 1
      %p119 = por %p117, %p118
      %p120 = scmp.ne.s32.totalorder %s112, %s115
      %p121 = scmp.eq.s32.totalorder %s13, 0
      %p122 = por %p120, %p121
      %p123 = scmp.ne.s32.totalorder %s112, %s115
      %p124 = scmp.eq.s32.totalorder %s18, 1
      %p125 = por %p123, %p124
      %p126 = scmp.ne.s32.totalorder %s115, %s116
      %p127 = scmp.eq.s32.totalorder %s18, 0
      %p128 = por %p126, %p127
      %p129 = scmp.ne.s32.totalorder %s115, %s116
      %p130 = scmp.eq.s32.totalorder %s19, 1
      %p131 = por %p129, %p130
      %p133 = scmp.ne.s32.totalorder %s116, %s132
      %p134 = scmp.eq.s32.totalorder %s19, 0
      %p135 = por %p133, %p134
      %p136 = scmp.le.s32.totalorder 1, %s13
      %p137 = scmp.lt.s32.totalorder %s13, 3
      %p138 = pnand %p136, %p137
      %p139 = pneg %p138
      // Predicated region
      $region9: #{tpu_custom_call.1} parent=5 // pred_check
        _
      $region10: #{tpu_custom_call.1} parent=5 // pred_check_branch
        %141 = sbr.rel (%p138) target = $region12
      $region11: #{tpu_custom_call.1} parent=5 // pred_region
        %s142 = ssub.s32 %s13, 1
        // Predicated region
        $region13: #{tpu_custom_call.1} parent=11 // pred_check
          %p143 = pneg %p60
        $region14: #{tpu_custom_call.1} parent=11 // pred_check_branch
          %145 = sbr.rel (%p143) target = $region16
        $region15: #{tpu_custom_call.1} parent=11 // pred_region
          _
        $region16: #{tpu_custom_call.1} parent=11 // pred_fallthru
          _
        // Predicated region
        $region17: #{tpu_custom_call.1} parent=11 // pred_check
          %p146 = pneg %p81
        $region18: #{tpu_custom_call.1} parent=11 // pred_check_branch
          %148 = sbr.rel (%p146) target = $region20
        $region19: #{tpu_custom_call.1} parent=11 // pred_region
          _
        $region20: #{tpu_custom_call.1} parent=11 // pred_fallthru
          _
        // Predicated region
        $region21: #{tpu_custom_call.1} parent=11 // pred_check
          %p149 = pneg %p102
        $region22: #{tpu_custom_call.1} parent=11 // pred_check_branch
          %151 = sbr.rel (%p149) target = $region24
        $region23: #{tpu_custom_call.1} parent=11 // pred_region
          _
        $region24: #{tpu_custom_call.1} parent=11 // pred_fallthru
          _
      $region12: #{tpu_custom_call.1} parent=5 // pred_fallthru
        _
      %p152 = scmp.lt.s32.totalorder %s13, 2
      // Predicated region
      $region25: #{tpu_custom_call.1} parent=5 // pred_check
        %p153 = pneg %p152
      $region26: #{tpu_custom_call.1} parent=5 // pred_check_branch
        %155 = sbr.rel (%p153) target = $region28
      $region27: #{tpu_custom_call.1} parent=5 // pred_region
        // Predicated region
        $region29: #{tpu_custom_call.1} parent=27 // pred_check
          %p156 = pneg %p33
        $region30: #{tpu_custom_call.1} parent=27 // pred_check_branch
          %158 = sbr.rel (%p156) target = $region32
        $region31: #{tpu_custom_call.1} parent=27 // pred_region
          %p159 = scmp.lt.s32.totalorder %s13, 1
          %s160 = scalar_select %p159, %s13, 1
          %s161 = smul.addr %s160, 2
          %s162 = smul.addr %s161, 4
          %s163 = scalar_lea.vmem %s0, %s162
        $region32: #{tpu_custom_call.1} parent=27 // pred_fallthru
          _
      $region28: #{tpu_custom_call.1} parent=5 // pred_fallthru
        _
      %p164 = scmp.le.s32.totalorder 1, %s13
      %p165 = scmp.lt.s32.totalorder %s13, 3
      %p166 = pnand %p164, %p165
      %p167 = pneg %p166
      // Predicated region
      $region33: #{tpu_custom_call.1} parent=5 // pred_check
        _
      $region34: #{tpu_custom_call.1} parent=5 // pred_check_branch
        %169 = sbr.rel (%p166) target = $region36
      $region35: #{tpu_custom_call.1} parent=5 // pred_region
        %s170 = ssub.s32 %s13, 1
        %p171 = scmp.lt.s32.totalorder %s18, 1
        %s172 = scalar_select %p171, %s18, 1
        %s173 = smul.addr %s172, 2
        %s174 = smul.addr %s173, 4
        %s175 = scalar_lea.vmem %s0, %s174
        %p176 = pneg %p39
        %p177 = pneg %p36
        %p178 = pneg %p60
        %p179 = pneg %p57
        %p180 = pneg %p81
        %p181 = pneg %p78
        %p182 = pneg %p102
        %p183 = pneg %p99
        %p184 = pneg %p128
        %p185 = pneg %p125
        %s186 = sand.u32 %s115, 1
        %s187 = scalar_lea.sflag [#allocation3], %s186
        %s188 = sand.u32 %s115, 1
        %s189 = smul.addr %s188, 8
        %s190 = scalar_lea.vmem [#allocation2], %s189
        %p191 = scmp.lt.s32.totalorder %s18, 1
        %s192 = scalar_select %p191, %s18, 1
        %s193 = smul.addr %s192, 2
        %s194 = smul.addr %s193, 4
        %s195 = scalar_lea.vmem %s0, %s194
        %v197 = vld [vmem:[%s195] sm:$0xf]
        %v198 = vld [vmem:[%s195 + $0x4] sm:$0xf]
        %v199 = vld [vmem:[%s1] sm:$0xf]
        %s200 = scalar_lea.vmem %s1, 4
        %v201 = vld [vmem:[%s200] sm:$0xf]
        %v204 = vunpack.c.l.b16 %v197
        %v205 = vunpack.c.l.b16 %v198
        %v206 = vpack.c.b16 %v205, %v204
        %207 = vrot.lane.b32.xlu0 %v206, 127
        %v208 = vpop.permute.xlu0 %207
        %vm210 = vcmask 130048
        %v212 = vsel %vm210, %v201, 0
        %214 = vmatprep.subr.bf16.mxu0 0
        %215 = vmatpush1.bf16.msra.mxu0 %v208
        %216 = vmatprep.subr.bf16.mxu0 0
        %217 = vmatpush1.bf16.msra.mxu0 0
        %218 = vmatprep.subr.bf16.mxu0 0
        %219 = vmatpush1.bf16.msra.mxu0 0
        %220 = vmatprep.subr.bf16.mxu0 0
        %221 = vmatpush1.bf16.msra.mxu0 0
        %222 = vmatprep.subr.bf16.mxu0 0
        %223 = vmatpush1.bf16.msra.mxu0 0
        %224 = vmatprep.subr.bf16.mxu0 0
        %225 = vmatpush1.bf16.msra.mxu0 0
        %226 = vmatprep.subr.bf16.mxu0 0
        %227 = vmatpush1.bf16.msra.mxu0 0
        %228 = vmatprep.subr.bf16.mxu0 0
        %229 = vmatpush1.bf16.msra.mxu0 0
        %230 = vmatprep.subr.bf16.mxu0 0
        %231 = vmatpush1.bf16.msra.mxu0 0
        %232 = vmatprep.subr.bf16.mxu0 0
        %233 = vmatpush1.bf16.msra.mxu0 0
        %234 = vmatprep.subr.bf16.mxu0 0
        %235 = vmatpush1.bf16.msra.mxu0 0
        %236 = vmatprep.subr.bf16.mxu0 0
        %237 = vmatpush1.bf16.msra.mxu0 0
        %238 = vmatprep.subr.bf16.mxu0 0
        %239 = vmatpush1.bf16.msra.mxu0 0
        %240 = vmatprep.subr.bf16.mxu0 0
        %241 = vmatpush1.bf16.msra.mxu0 0
        %242 = vmatprep.subr.bf16.mxu0 0
        %243 = vmatpush1.bf16.msra.mxu0 0
        %244 = vmatprep.subr.bf16.mxu0 0
        %245 = vmatpush1.bf16.msra.mxu0 0
        %246 = vmatprep.mubr.bf16.mxu0 0
        %247 = vmatmul.mubr.bf16.gmra.mrb[0].mxu0 %v212
        %v248 = vpop.f32.mrb[0].mxu0
        %v249 = vadd.f32 0.0, %v248
        %v250 = vpop.f32.mrb[0].mxu0
        %v251 = vpop.f32.mrb[0].mxu0
        %v252 = vpop.f32.mrb[0].mxu0
        %253 = vdwg.mxu0
        %v256 = vsel %vm210, %v199, 0
        %258 = vmatprep.subr.bf16.mxu0 0
        %259 = vmatpush1.bf16.msra.mxu0 %v206
        %260 = vmatprep.subr.bf16.mxu0 0
        %261 = vmatpush1.bf16.msra.mxu0 0
        %262 = vmatprep.subr.bf16.mxu0 0
        %263 = vmatpush1.bf16.msra.mxu0 0
        %264 = vmatprep.subr.bf16.mxu0 0
        %265 = vmatpush1.bf16.msra.mxu0 0
        %266 = vmatprep.subr.bf16.mxu0 0
        %267 = vmatpush1.bf16.msra.mxu0 0
        %268 = vmatprep.subr.bf16.mxu0 0
        %269 = vmatpush1.bf16.msra.mxu0 0
        %270 = vmatprep.subr.bf16.mxu0 0
        %271 = vmatpush1.bf16.msra.mxu0 0
        %272 = vmatprep.subr.bf16.mxu0 0
        %273 = vmatpush1.bf16.msra.mxu0 0
        %274 = vmatprep.subr.bf16.mxu0 0
        %275 = vmatpush1.bf16.msra.mxu0 0
        %276 = vmatprep.subr.bf16.mxu0 0
        %277 = vmatpush1.bf16.msra.mxu0 0
        %278 = vmatprep.subr.bf16.mxu0 0
        %279 = vmatpush1.bf16.msra.mxu0 0
        %280 = vmatprep.subr.bf16.mxu0 0
        %281 = vmatpush1.bf16.msra.mxu0 0
        %282 = vmatprep.subr.bf16.mxu0 0
        %283 = vmatpush1.bf16.msra.mxu0 0
        %284 = vmatprep.subr.bf16.mxu0 0
        %285 = vmatpush1.bf16.msra.mxu0 0
        %286 = vmatprep.subr.bf16.mxu0 0
        %287 = vmatpush1.bf16.msra.mxu0 0
        %288 = vmatprep.subr.bf16.mxu0 0
        %289 = vmatpush1.bf16.msra.mxu0 0
        %290 = vmatprep.mubr.bf16.mxu0 0
        %291 = vmatmul.mubr.bf16.gmra.mrb[0].mxu0 %v256
        %v292 = vpop.f32.mrb[0].mxu0
        %v293 = vadd.f32 %v249, %v292
        %v294 = vpop.f32.mrb[0].mxu0
        %v295 = vpop.f32.mrb[0].mxu0
        %v296 = vpop.f32.mrb[0].mxu0
        %297 = vdwg.mxu0
        %s298 = scalar_lea.vmem %s1, 8
        %v299 = vld [vmem:[%s298] sm:$0xf]
        %300 = vrot.lane.b32.xlu0 %v206, 119
        %v301 = vpop.permute.xlu0 %300
        %v304 = vsel %vm210, %v299, 0
        %306 = vmatprep.subr.bf16.mxu0 0
        %307 = vmatpush1.bf16.msra.mxu0 %v301
        %308 = vmatprep.subr.bf16.mxu0 0
        %309 = vmatpush1.bf16.msra.mxu0 0
        %310 = vmatprep.subr.bf16.mxu0 0
        %311 = vmatpush1.bf16.msra.mxu0 0
        %312 = vmatprep.subr.bf16.mxu0 0
        %313 = vmatpush1.bf16.msra.mxu0 0
        %314 = vmatprep.subr.bf16.mxu0 0
        %315 = vmatpush1.bf16.msra.mxu0 0
        %316 = vmatprep.subr.bf16.mxu0 0
        %317 = vmatpush1.bf16.msra.mxu0 0
        %318 = vmatprep.subr.bf16.mxu0 0
        %319 = vmatpush1.bf16.msra.mxu0 0
        %320 = vmatprep.subr.bf16.mxu0 0
        %321 = vmatpush1.bf16.msra.mxu0 0
        %322 = vmatprep.subr.bf16.mxu0 0
        %323 = vmatpush1.bf16.msra.mxu0 0
        %324 = vmatprep.subr.bf16.mxu0 0
        %325 = vmatpush1.bf16.msra.mxu0 0
        %326 = vmatprep.subr.bf16.mxu0 0
        %327 = vmatpush1.bf16.msra.mxu0 0
        %328 = vmatprep.subr.bf16.mxu0 0
        %329 = vmatpush1.bf16.msra.mxu0 0
        %330 = vmatprep.subr.bf16.mxu0 0
        %331 = vmatpush1.bf16.msra.mxu0 0
        %332 = vmatprep.subr.bf16.mxu0 0
        %333 = vmatpush1.bf16.msra.mxu0 0
        %334 = vmatprep.subr.bf16.mxu0 0
        %335 = vmatpush1.bf16.msra.mxu0 0
        %336 = vmatprep.subr.bf16.mxu0 0
        %337 = vmatpush1.bf16.msra.mxu0 0
        %338 = vmatprep.mubr.bf16.mxu0 0
        %339 = vmatmul.mubr.bf16.gmra.mrb[0].mxu0 %v304
        %v340 = vpop.f32.mrb[0].mxu0
        %v341 = vadd.f32 0.0, %v340
        %v342 = vpop.f32.mrb[0].mxu0
        %v343 = vpop.f32.mrb[0].mxu0
        %v344 = vpop.f32.mrb[0].mxu0
        %345 = vdwg.mxu0
        %v346 = vadd.f32 %v293, %v341
        %s347 = scalar_lea.vmem %s1, 12
        %v348 = vld [vmem:[%s347] sm:$0xf]
        %349 = vrot.lane.b32.xlu0 %v206, 118
        %v350 = vpop.permute.xlu0 %349
        %v353 = vsel %vm210, %v348, 0
        %355 = vmatprep.subr.bf16.mxu0 0
        %356 = vmatpush1.bf16.msra.mxu0 %v350
        %357 = vmatprep.subr.bf16.mxu0 0
        %358 = vmatpush1.bf16.msra.mxu0 0
        %359 = vmatprep.subr.bf16.mxu0 0
        %360 = vmatpush1.bf16.msra.mxu0 0
        %361 = vmatprep.subr.bf16.mxu0 0
        %362 = vmatpush1.bf16.msra.mxu0 0
        %363 = vmatprep.subr.bf16.mxu0 0
        %364 = vmatpush1.bf16.msra.mxu0 0
        %365 = vmatprep.subr.bf16.mxu0 0
        %366 = vmatpush1.bf16.msra.mxu0 0
        %367 = vmatprep.subr.bf16.mxu0 0
        %368 = vmatpush1.bf16.msra.mxu0 0
        %369 = vmatprep.subr.bf16.mxu0 0
        %370 = vmatpush1.bf16.msra.mxu0 0
        %371 = vmatprep.subr.bf16.mxu0 0
        %372 = vmatpush1.bf16.msra.mxu0 0
        %373 = vmatprep.subr.bf16.mxu0 0
        %374 = vmatpush1.bf16.msra.mxu0 0
        %375 = vmatprep.subr.bf16.mxu0 0
        %376 = vmatpush1.bf16.msra.mxu0 0
        %377 = vmatprep.subr.bf16.mxu0 0
        %378 = vmatpush1.bf16.msra.mxu0 0
        %379 = vmatprep.subr.bf16.mxu0 0
        %380 = vmatpush1.bf16.msra.mxu0 0
        %381 = vmatprep.subr.bf16.mxu0 0
        %382 = vmatpush1.bf16.msra.mxu0 0
        %383 = vmatprep.subr.bf16.mxu0 0
        %384 = vmatpush1.bf16.msra.mxu0 0
        %385 = vmatprep.subr.bf16.mxu0 0
        %386 = vmatpush1.bf16.msra.mxu0 0
        %387 = vmatprep.mubr.bf16.mxu0 0
        %388 = vmatmul.mubr.bf16.gmra.mrb[0].mxu0 %v353
        %v389 = vpop.f32.mrb[0].mxu0
        %v390 = vadd.f32 0.0, %v389
        %v391 = vpop.f32.mrb[0].mxu0
        %v392 = vpop.f32.mrb[0].mxu0
        %v393 = vpop.f32.mrb[0].mxu0
        %394 = vdwg.mxu0
        %v395 = vadd.f32 %v346, %v390
        %v396 = vld [vmem:[%s2] sm:$0xff]
        %v397 = vld [vmem:[%s2 + $0x8] sm:$0xff]
        %v398 = vld [vmem:[%s2 + $0x10] sm:$0xff]
        %v399 = vld [vmem:[%s2 + $0x18] sm:$0xff]
        %v400 = vld [vmem:[%s2 + $0x20] sm:$0xff]
        %v401 = vld [vmem:[%s2 + $0x28] sm:$0xff]
        %v402 = vld [vmem:[%s2 + $0x30] sm:$0xff]
        %v403 = vld [vmem:[%s2 + $0x38] sm:$0xff]
        %v404 = vld [vmem:[%s2 + $0x40] sm:$0xff]
        %v405 = vld [vmem:[%s3] sm:$0xff]
        %407 = vset.pattern.permute.xlu0 0
        %408 = vperm.xlu0 %407, %v405
        %v409 = vpop.permute.xlu0 %408
        %vm411 = vcmask 588800
        %v413 = vsel %vm411, %v395, 0
        %415 = vmatprep.subr.mxu0 0.0
        %416 = vmatpush1.msra.mxu0 %v396
        %417 = vmatprep.subr.mxu0 0.0
        %418 = vmatpush1.msra.mxu0 %v397
        %419 = vmatprep.subr.mxu0 0.0
        %420 = vmatpush1.msra.mxu0 %v398
        %421 = vmatprep.subr.mxu0 0.0
        %422 = vmatpush1.msra.mxu0 %v399
        %423 = vmatprep.subr.mxu0 0.0
        %424 = vmatpush1.msra.mxu0 %v400
        %425 = vmatprep.subr.mxu0 0.0
        %426 = vmatpush1.msra.mxu0 %v401
        %427 = vmatprep.subr.mxu0 0.0
        %428 = vmatpush1.msra.mxu0 %v402
        %429 = vmatprep.subr.mxu0 0.0
        %430 = vmatpush1.msra.mxu0 %v403
        %431 = vmatprep.subr.mxu0 0.0
        %432 = vmatpush1.msra.mxu0 %v404
        %433 = vmatprep.subr.mxu0 0.0
        %434 = vmatpush1.msra.mxu0 0.0
        %435 = vmatprep.subr.mxu0 0.0
        %436 = vmatpush1.msra.mxu0 0.0
        %437 = vmatprep.subr.mxu0 0.0
        %438 = vmatpush1.msra.mxu0 0.0
        %439 = vmatprep.subr.mxu0 0.0
        %440 = vmatpush1.msra.mxu0 0.0
        %441 = vmatprep.subr.mxu0 0.0
        %442 = vmatpush1.msra.mxu0 0.0
        %443 = vmatprep.subr.mxu0 0.0
        %444 = vmatpush1.msra.mxu0 0.0
        %445 = vmatprep.subr.mxu0 0.0
        %446 = vmatpush1.msra.mxu0 0.0
        %447 = vmatprep.subr.mxu0 0.0
        %448 = vmatpush1.msra.mxu0 0.0
        %449 = vmatprep.subr.mxu0 0.0
        %450 = vmatpush1.msra.mxu0 0.0
        %451 = vmatprep.subr.mxu0 0.0
        %452 = vmatpush1.msra.mxu0 0.0
        %453 = vmatprep.subr.mxu0 0.0
        %454 = vmatpush1.msra.mxu0 0.0
        %455 = vmatprep.subr.mxu0 0.0
        %456 = vmatpush1.msra.mxu0 0.0
        %457 = vmatprep.subr.mxu0 0.0
        %458 = vmatpush1.msra.mxu0 0.0
        %459 = vmatprep.subr.mxu0 0.0
        %460 = vmatpush1.msra.mxu0 0.0
        %461 = vmatprep.subr.mxu0 0.0
        %462 = vmatpush1.msra.mxu0 0.0
        %463 = vmatprep.subr.mxu0 0.0
        %464 = vmatpush1.msra.mxu0 0.0
        %465 = vmatprep.subr.mxu0 0.0
        %466 = vmatpush1.msra.mxu0 0.0
        %467 = vmatprep.subr.mxu0 0.0
        %468 = vmatpush1.msra.mxu0 0.0
        %469 = vmatprep.subr.mxu0 0.0
        %470 = vmatpush1.msra.mxu0 0.0
        %471 = vmatprep.subr.mxu0 0.0
        %472 = vmatpush1.msra.mxu0 0.0
        %473 = vmatprep.subr.mxu0 0.0
        %474 = vmatpush1.msra.mxu0 0.0
        %475 = vmatprep.subr.mxu0 0.0
        %476 = vmatpush1.msra.mxu0 0.0
        %477 = vmatprep.subr.mxu0 0.0
        %478 = vmatpush1.msra.mxu0 0.0
        %479 = vmatprep.mubr.f32.mxu0 0.0
        %480 = vmatmul.mubr.f32.gmra.mrb[0].mxu0 %v413
        %v481 = vpop.f32.mrb[0].mxu0
        %v482 = vadd.f32 %v409, %v481
        %v483 = vpop.f32.mrb[0].mxu0
        %484 = vdwg.mxu0
        %v485 = vmax.f32 %v482, 0.0
        %vm486 = vcmask 523264
        %487 = vst.msk [vmem:[%s190] sm:$0xff] %vm486, %v485
        %s488 = sand.u32 %s115, 1
        %s489 = scalar_lea.sflag [#allocation3], %s488
        %s490 = sand.u32 %s115, 1
        %s491 = smul.addr %s490, 8
        %s492 = scalar_lea.vmem [#allocation2], %s491
        // Predicated region
        $region37: #{tpu_custom_call.1} parent=35 // pred_check
          %p493 = pneg %p125
        $region38: #{tpu_custom_call.1} parent=35 // pred_check_branch
          %495 = sbr.rel (%p493) target = $region40
        $region39: #{tpu_custom_call.1} parent=35 // pred_region
          %s497 = ssub.s32 128, 128
          %498 = vsyncadd %s489, %s497
          %s499 = smul.addr %s18, 128
          %s500 = scalar_lea.hbm %s4, %s499
          %s502 = sshll.u32 %s492, 4
          %s503 = int_to_ptr.vmem [resolvable:$true] %s502
          %505 = dma.vmem_to_hbm [thread:$0]  %s503, 128, %s500, %s489
        $region40: #{tpu_custom_call.1} parent=35 // pred_fallthru
          _
      $region36: #{tpu_custom_call.1} parent=5 // pred_fallthru
        _
      %p506 = scmp.le.s32.totalorder 2, %s13
      // Predicated region
      $region41: #{tpu_custom_call.1} parent=5 // pred_check
        %p507 = pneg %p506
      $region42: #{tpu_custom_call.1} parent=5 // pred_check_branch
        %509 = sbr.rel (%p507) target = $region44
      $region43: #{tpu_custom_call.1} parent=5 // pred_region
        %s510 = ssub.s32 %s13, 2
        // Predicated region
        $region45: #{tpu_custom_call.1} parent=43 // pred_check
          %p511 = pneg %p131
        $region46: #{tpu_custom_call.1} parent=43 // pred_check_branch
          %513 = sbr.rel (%p511) target = $region48
        $region47: #{tpu_custom_call.1} parent=43 // pred_region
          %s514 = sand.u32 %s116, 1
          %s515 = scalar_lea.sflag [#allocation3], %s514
          %s516 = sand.u32 %s116, 1
          %s517 = smul.addr %s516, 8
          %s518 = scalar_lea.vmem [#allocation2], %s517
          %519 = dma.done %s515, 128
        $region48: #{tpu_custom_call.1} parent=43 // pred_fallthru
          _
      $region44: #{tpu_custom_call.1} parent=5 // pred_fallthru
        _
    $region6: #{tpu_custom_call.1} parent=1 // loop_footer
      %s17 = sadd.s32 1, %s13
    $region7: #{tpu_custom_call.1} parent=1 // loop_footer_branch
      %12 = sbr.rel target = $region3
    $region8: #{tpu_custom_call.1} parent=1 // loop_exit
      _
    %520 = vsyncpa [#allocation3], 1
    %s521 = scalar_lea.sflag [#allocation3], 1
    %522 = vsyncpa %s521, 1

</llo_original>
